<compile_context>
chip_gen: v6e
topology: v6e:2x2x1
jax: 0.10.0
libtpu: 0.0.40
codegen_flags: <defaults>
</compile_context>

<pallas_src>
import functools

import jax
import jax.numpy as jnp
from jax import lax
from jax.experimental import pallas as pl
from jax.experimental.pallas import tpu as pltpu

LN_EPS = 1e-5
LANE = 128

PARAM_ORDER = ("ln1w", "ln1b", "wq", "bq", "wk", "bk", "wv", "bv",
               "projw", "projb", "ln2w", "ln2b", "fc1w", "fc1b", "fc2w", "fc2b")


# ----------------------------------------------------------------------------
# Small helpers
# ----------------------------------------------------------------------------
def _round_up(x, m):
    return (x + m - 1) // m * m


def _pad_axis(a, axis, target):
    cfg = [(0, 0)] * a.ndim
    cfg[axis] = (0, target - a.shape[axis])
    return jnp.pad(a, cfg)


def _bf16_matmul(a, w):
    """(M, K) @ (K, N) on the MXU with bf16 operands, f32 accumulation."""
    return lax.dot_general(
        a.astype(jnp.bfloat16), w.astype(jnp.bfloat16),
        dimension_numbers=(((1,), (0,)), ((), ())),
        preferred_element_type=jnp.float32)


def _layernorm_math(v, g, b, d_true):
    """v: (M, D_pad) f32 with padded lanes == 0; g/b: (1, D_pad), padded lanes 0.

    Mean / variance are taken over the TRUE feature count so padding does not
    change the result; padded output lanes stay 0 because g, b are 0 there.
    """
    inv = 1.0 / d_true
    mu = jnp.sum(v, axis=-1, keepdims=True) * inv
    var = jnp.sum(v * v, axis=-1, keepdims=True) * inv - mu * mu
    return (v - mu) * lax.rsqrt(var + LN_EPS) * g + b


# ----------------------------------------------------------------------------
# Pallas kernels
# ----------------------------------------------------------------------------
def _linear_kernel(x_ref, w_ref, b_ref, o_ref):
    y = _bf16_matmul(x_ref[...], w_ref[...]) + b_ref[...].astype(jnp.float32)
    o_ref[...] = y.astype(o_ref.dtype)


def linear(x, w, b, *, tm=256):
    """x: (M, K) f32, w: (K, N) bf16, b: (1, N) f32 -> (M, N) f32.

    Row-tiled with a cdiv grid; the wrapper pads M up to a tile multiple.
    K and N are lane-dense (multiples of 128) by construction.
    """
    M, K = x.shape
    N = w.shape[1]
    tm = min(tm, _round_up(M, 8))
    grid_m = pl.cdiv(M, tm)
    Mp = grid_m * tm
    if Mp != M:
        x = jnp.pad(x, ((0, Mp - M), (0, 0)))
    out = pl.pallas_call(
        _linear_kernel,
        grid=(grid_m,),
        in_specs=[pl.BlockSpec((tm, K), lambda i: (i, 0)),
                  pl.BlockSpec((K, N), lambda i: (0, 0)),
                  pl.BlockSpec((1, N), lambda i: (0, 0))],
        out_specs=pl.BlockSpec((tm, N), lambda i: (i, 0)),
        out_shape=jax.ShapeDtypeStruct((Mp, N), jnp.float32),
        compiler_params=pltpu.CompilerParams(
            dimension_semantics=("parallel",),
            vmem_limit_bytes=32 * 1024 * 1024),
    )(x, w, b)
    return out[:M]


def _vit_stack_kernel(x_ref, lnf_w_ref, lnf_b_ref,
                      ln1w, ln1b, wq, bq, wk, bk, wv, bv,
                      projw, projb, ln2w, ln2b, fc1w, fc1b, fc2w, fc2b,
                      o_ref, *, num_heads, head_dim_pad, d_true, n_true,
                      fuse_final_ln):
    """One pre-norm ViT Block per grid step along the layer axis.

    Grid is (batch, layer).  The kernel view per step is a single batch
    element: x_ref / o_ref are (N_pad, D_pad).  The activation accumulates in
    o_ref (same output block for every layer -> VMEM-resident for the whole
    stack); HBM sees x once on the way in and the final output on the way out.
    """
    layer = pl.program_id(1)
    last = pl.num_programs(1) - 1

    @pl.when(layer == 0)
    def _():
        o_ref[...] = x_ref[...].astype(jnp.float32)

    x = o_ref[...]                                  # (N_pad, D_pad) f32
    n_pad = x.shape[0]

    # Padded tokens (>= n_true) must not act as attention keys.
    col = lax.broadcasted_iota(jnp.int32, (n_pad, n_pad), 1)
    key_mask = jnp.where(col < n_true, 0.0, -1e30).astype(jnp.float32)

    # ---- attention (pre-norm) ----
    h = _layernorm_math(x, ln1w[...], ln1b[...], d_true)
    hb = h.astype(jnp.bfloat16)
    # Attention scale is folded into wq / bq at init.
    q = _bf16_matmul(hb, wq[...]) + bq[...]          # (N_pad, H*hdp) f32
    k = _bf16_matmul(hb, wk[...]) + bk[...]
    v = _bf16_matmul(hb, wv[...]) + bv[...]
    qb = q.astype(jnp.bfloat16)
    kb = k.astype(jnp.bfloat16)
    vb = v.astype(jnp.bfloat16)

    heads = []
    for hh in range(num_heads):                      # static; 128-aligned slices
        sl = slice(hh * head_dim_pad, (hh + 1) * head_dim_pad)
        # contract head_dim of q and k directly: no materialized K transpose
        s = lax.dot_general(qb[:, sl], kb[:, sl], (((1,), (1,)), ((), ())),
                            preferred_element_type=jnp.float32)  # (N_pad, N_pad)
        s = s + key_mask
        p = jnp.exp(s - jnp.max(s, axis=-1, keepdims=True))
        p = p * pl.reciprocal(jnp.sum(p, axis=-1, keepdims=True), approx=True)
        oh = lax.dot_general(p.astype(jnp.bfloat16), vb[:, sl],
                             (((1,), (0,)), ((), ())),
                             preferred_element_type=jnp.float32)  # (N_pad, hdp)
        heads.append(oh.astype(jnp.bfloat16))
    attn = jnp.concatenate(heads, axis=-1)           # 128-lane-aligned concat
    x = x + lax.dot_general(attn, projw[...], (((1,), (0,)), ((), ())),
                            preferred_element_type=jnp.float32) + projb[...]

    # ---- MLP (pre-norm) ----
    h = _layernorm_math(x, ln2w[...], ln2b[...], d_true)
    m = _bf16_matmul(h.astype(jnp.bfloat16), fc1w[...]) + fc1b[...]
    # TODO(synk): torch nn.GELU defaults to the exact erf GELU; tanh approx used here.
    m = jax.nn.gelu(m, approximate=True)
    x = x + _bf16_matmul(m.astype(jnp.bfloat16), fc2w[...]) + fc2b[...]

    o_ref[...] = x

    if fuse_final_ln:
        @pl.when(layer == last)
        def _():
            o_ref[...] = _layernorm_math(o_ref[...], lnf_w_ref[...],
                                         lnf_b_ref[...], d_true)


def transformer_stack(x, stack, *, num_heads, head_dim_pad, d_true, n_true,
                      final_ln=None):
    """x: (B, N_pad, D_pad) f32.  Runs ALL layers of a block stack in one
    pallas_call; optionally fuses a final LayerNorm into the epilogue."""
    B, n_pad, d_pad = x.shape
    L = stack["ln1w"].shape[0]
    weights = [stack[name] for name in PARAM_ORDER]

    fuse = final_ln is not None
    if fuse:
        lnf_w, lnf_b = final_ln
    else:
        lnf_w = jnp.ones((1, d_pad), jnp.float32)
        lnf_b = jnp.zeros((1, d_pad), jnp.float32)

    kern = functools.partial(
        _vit_stack_kernel, num_heads=num_heads, head_dim_pad=head_dim_pad,
        d_true=d_true, n_true=n_true, fuse_final_ln=fuse)

    # Per-batch activation blocks (leading dim squeezed -> kernel sees 2D).
    act_spec = pl.BlockSpec((None, n_pad, d_pad), lambda b, l: (b, 0, 0))
    lnf_spec = pl.BlockSpec((1, d_pad), lambda b, l: (0, 0))
    w_specs = [pl.BlockSpec((None,) + w.shape[1:], lambda b, l: (l, 0, 0))
               for w in weights]

    return pl.pallas_call(
        kern,
        grid=(B, L),   # batch axis parallel (megacore/v7x), layer axis arbitrary
        in_specs=[act_spec, lnf_spec, lnf_spec] + w_specs,
        out_specs=pl.BlockSpec((None, n_pad, d_pad), lambda b, l: (b, 0, 0)),
        out_shape=jax.ShapeDtypeStruct((B, n_pad, d_pad), jnp.float32),
        compiler_params=pltpu.CompilerParams(
            dimension_semantics=("parallel", "arbitrary"),
            vmem_limit_bytes=32 * 1024 * 1024),
    )(x, lnf_w, lnf_b, *weights)


# ----------------------------------------------------------------------------
# Glue (pure JAX): gathers, patchify, un-patchify, parameter init
# ----------------------------------------------------------------------------
def take_indexes(seq, idx):
    """seq: (S, B, C), idx: (S', B) -> (S', B, C) gather along dim 0."""
    idx3 = jnp.broadcast_to(idx[:, :, None], idx.shape + (seq.shape[-1],))
    return jnp.take_along_axis(seq, idx3, axis=0)


def patch2img(patches, hp, p, c):
    """'(h w) b (c p1 p2) -> b c (h p1) (w p2)'"""
    _, B, _ = patches.shape
    x = patches.reshape(hp, hp, B, c, p, p)
    x = x.transpose(2, 3, 0, 4, 1, 5)
    return x.reshape(B, c, hp * p, hp * p)


def init_block_stack(key, L, d_true, num_head, head_dim_pad, mlp_ratio=4):
    """Per-layer weights stacked along a leading layer axis, padded lane-dense.

    True weights are generated at the unpadded sizes and zero-padded so the
    padded model computes exactly the unpadded forward pass.  Matmul weights
    are stored in bf16; LN scales / biases stay f32.
    """
    std = 0.02
    head_dim = d_true // num_head
    d_pad = _round_up(d_true, LANE)
    qkv_pad = num_head * head_dim_pad
    hid_true = d_true * mlp_ratio
    hid_pad = _round_up(hid_true, LANE)
    scale = head_dim ** -0.5
    f32, bf16 = jnp.float32, jnp.bfloat16
    ks = jax.random.split(key, 6)

    def pad_qkv_w(w):  # (L, d_true, d_true) -> (L, d_pad, qkv_pad), per-head cols
        w = w.reshape(L, d_true, num_head, head_dim)
        w = _pad_axis(w, 3, head_dim_pad).reshape(L, d_true, qkv_pad)
        return _pad_axis(w, 1, d_pad)

    wq = jax.random.normal(ks[0], (L, d_true, d_true), f32) * std
    wk = jax.random.normal(ks[1], (L, d_true, d_true), f32) * std
    wv = jax.random.normal(ks[2], (L, d_true, d_true), f32) * std
    projw = jax.random.normal(ks[3], (L, d_true, d_true), f32) * std
    fc1w = jax.random.normal(ks[4], (L, d_true, hid_true), f32) * std
    fc2w = jax.random.normal(ks[5], (L, hid_true, d_true), f32) * std

    # proj rows are laid out per head
    projw = projw.reshape(L, num_head, head_dim, d_true)
    projw = _pad_axis(projw, 2, head_dim_pad).reshape(L, qkv_pad, d_true)
    projw = _pad_axis(projw, 2, d_pad)

    return {
        "ln1w": _pad_axis(jnp.ones((L, 1, d_true), f32), 2, d_pad),
        "ln1b": jnp.zeros((L, 1, d_pad), f32),
        # attention scale folded into the query projection
        "wq": (pad_qkv_w(wq) * scale).astype(bf16),
        "bq": jnp.zeros((L, 1, qkv_pad), f32),
        "wk": pad_qkv_w(wk).astype(bf16),
        "bk": jnp.zeros((L, 1, qkv_pad), f32),
        "wv": pad_qkv_w(wv).astype(bf16),
        "bv": jnp.zeros((L, 1, qkv_pad), f32),
        "projw": projw.astype(bf16),
        "projb": jnp.zeros((L, 1, d_pad), f32),
        "ln2w": _pad_axis(jnp.ones((L, 1, d_true), f32), 2, d_pad),
        "ln2b": jnp.zeros((L, 1, d_pad), f32),
        "fc1w": _pad_axis(_pad_axis(fc1w, 2, hid_pad), 1, d_pad).astype(bf16),
        "fc1b": jnp.zeros((L, 1, hid_pad), f32),
        "fc2w": _pad_axis(_pad_axis(fc2w, 1, hid_pad), 2, d_pad).astype(bf16),
        "fc2b": jnp.zeros((L, 1, d_pad), f32),
    }


def init_params(key, *, image_size, patch_size, emb_dim,
                encoder_layer, decoder_layer, num_head, mask_ratio):
    std = 0.02
    C = 3
    hp = image_size // patch_size
    num_patch = hp * hp
    d_true = emb_dim
    d_pad = _round_up(d_true, LANE)
    head_dim_pad = _round_up(max(d_true // num_head, 1), LANE)
    k_true = C * patch_size ** 2
    k_pad = _round_up(k_true, LANE)
    keys = jax.random.split(key, 8)
    f32, bf16 = jnp.float32, jnp.bfloat16

    patch_w = jax.random.normal(keys[0], (k_true, d_true), f32) * std
    head_w = jax.random.normal(keys[5], (d_true, k_true), f32) * std

    return {
        "image_size": image_size, "patch_size": patch_size,
        "emb_dim": d_true, "emb_dim_pad": d_pad,
        "num_head": num_head, "head_dim_pad": head_dim_pad,
        "mask_ratio": mask_ratio,
        "patch_dim": k_true, "patch_dim_pad": k_pad,
        # encoder
        "patch_w": _pad_axis(_pad_axis(patch_w, 0, k_pad), 1, d_pad).astype(bf16),
        "patch_b": jnp.zeros((1, d_pad), f32),
        "enc_pos": _pad_axis(
            jax.random.normal(keys[1], (num_patch, 1, d_true), f32) * std, 2, d_pad),
        "cls_token": _pad_axis(
            jax.random.normal(keys[2], (1, 1, d_true), f32) * std, 2, d_pad),
        "enc_ln_w": _pad_axis(jnp.ones((1, d_true), f32), 1, d_pad),
        "enc_ln_b": jnp.zeros((1, d_pad), f32),
        # decoder
        "mask_token": _pad_axis(
            jax.random.normal(keys[3], (1, 1, d_true), f32) * std, 2, d_pad),
        "dec_pos": _pad_axis(
            jax.random.normal(keys[4], (num_patch + 1, 1, d_true), f32) * std, 2, d_pad),
        "head_w": _pad_axis(_pad_axis(head_w, 0, d_pad), 1, k_pad).astype(bf16),
        "head_b": jnp.zeros((1, k_pad), f32),
        "enc_stack": init_block_stack(keys[6], encoder_layer, d_true, num_head,
                                      head_dim_pad),
        "dec_stack": init_block_stack(keys[7], decoder_layer, d_true, num_head,
                                      head_dim_pad),
    }


# ----------------------------------------------------------------------------
# Forward pass (MAE_ViT.forward)
# ----------------------------------------------------------------------------
def mae_vit_forward(img, params, shuffle_key):
    B, C, H, _ = img.shape
    p = params["patch_size"]
    d_true = params["emb_dim"]
    d_pad = params["emb_dim_pad"]
    num_head = params["num_head"]
    head_dim_pad = params["head_dim_pad"]
    k_true = params["patch_dim"]
    k_pad = params["patch_dim_pad"]
    hp = H // p
    num_patch = hp * hp

    # --- encoder: patch embedding (Conv2d k=p, stride=p == per-patch matmul) ---
    patches = img.reshape(B, C, hp, p, hp, p).transpose(0, 2, 4, 1, 3, 5)
    patches = patches.reshape(B * num_patch, k_true)
    patches = _pad_axis(patches, 1, k_pad)
    emb = linear(patches, params["patch_w"], params["patch_b"])        # Pallas
    emb = emb.reshape(B, num_patch, d_pad).transpose(1, 0, 2)          # (num_patch, B, Dp)
    emb = emb + params["enc_pos"]

    # --- PatchShuffle (deterministic via PRNGKey) ---
    remain = int(num_patch * (1 - params["mask_ratio"]))
    keys = jax.random.split(shuffle_key, B)
    fwd_idx = jax.vmap(lambda k: jax.random.permutation(k, num_patch))(keys)
    fwd_idx = fwd_idx.T.astype(jnp.int32)                              # (num_patch, B)
    bwd_idx = jnp.argsort(fwd_idx, axis=0).astype(jnp.int32)
    vis = take_indexes(emb, fwd_idx)[:remain]

    # --- cls token + fused encoder stack (final LN fused into epilogue) ---
    cls = jnp.broadcast_to(params["cls_token"], (1, B, d_pad))
    tokens = jnp.concatenate([cls, vis], axis=0)                       # (remain+1, B, Dp)
    n_enc = remain + 1
    n_enc_pad = _round_up(n_enc, 8)
    x = tokens.transpose(1, 0, 2)                                      # (B, n_enc, Dp)
    x = jnp.pad(x, ((0, 0), (0, n_enc_pad - n_enc), (0, 0)))
    x = transformer_stack(x, params["enc_stack"], num_heads=num_head,
                          head_dim_pad=head_dim_pad, d_true=d_true, n_true=n_enc,
                          final_ln=(params["enc_ln_w"], params["enc_ln_b"]))
    features = x[:, :n_enc].transpose(1, 0, 2)                         # (n_enc, B, Dp)

    # --- decoder ---
    bwd = jnp.concatenate([jnp.zeros((1, B), jnp.int32), bwd_idx + 1], axis=0)
    t_true = bwd.shape[0]                                              # num_patch + 1
    feats = jnp.concatenate(
        [features,
         jnp.broadcast_to(params["mask_token"], (t_true - n_enc, B, d_pad))],
        axis=0)
    feats = take_indexes(feats, bwd)
    feats = feats + params["dec_pos"]
    y = feats.transpose(1, 0, 2)                                       # (B, t_true, Dp)
    t_pad = _round_up(t_true, 8)
    y = jnp.pad(y, ((0, 0), (0, t_pad - t_true), (0, 0)))
    y = transformer_stack(y, params["dec_stack"], num_heads=num_head,
                          head_dim_pad=head_dim_pad, d_true=d_true, n_true=t_true,
                          final_ln=None)
    y = y[:, :t_true].transpose(1, 0, 2)[1:]                           # (num_patch, B, Dp)

    out = linear(y.reshape(num_patch * B, d_pad),
                 params["head_w"], params["head_b"])[:, :k_true]       # Pallas
    out = out.reshape(num_patch, B, k_true)

    mask = jnp.zeros_like(out)
    mask = mask.at[n_enc - 1:].set(1.0)
    mask = take_indexes(mask, bwd[1:] - 1)

    predicted_img = patch2img(out, hp, p, C)
    mask_img = patch2img(mask, hp, p, C)
    return predicted_img, mask_img


# ----------------------------------------------------------------------------
if __name__ == "__main__":
    key = jax.random.PRNGKey(0)
    k_img, k_param, k_shuf = jax.random.split(key, 3)

    # Small shapes consistent with the module: image 16x16, patch 2 -> 64 patches,
    # emb_dim 48 (3 heads x 16), 2 encoder + 2 decoder blocks, mask_ratio 0.75.
    B, C, H, W = 2, 3, 16, 16
    img = jax.random.normal(k_img, (B, C, H, W), jnp.float32)
    params = init_params(k_param, image_size=H, patch_size=2, emb_dim=48,
                         encoder_layer=2, decoder_layer=2, num_head=3,
                         mask_ratio=0.75)

    predicted_img, mask = mae_vit_forward(img, params, k_shuf)
    jax.block_until_ready((predicted_img, mask))

    assert predicted_img.shape == (B, C, H, W), predicted_img.shape
    assert mask.shape == (B, C, H, W), mask.shape
    assert bool(jnp.all(jnp.isfinite(predicted_img)))
    print("KERNEL_OK")
</pallas_src>

<mosaic_0001>
module attributes {stable_mosaic.version = 11 : i64} {
  func.func @_linear_kernel(%arg0: i32, %arg1: memref<128x128xf32, #tpu.memory_space<vmem>>, %arg2: memref<128x128xbf16, #tpu.memory_space<vmem>>, %arg3: memref<1x128xf32, #tpu.memory_space<vmem>>, %arg4: memref<128x128xf32, #tpu.memory_space<vmem>>) attributes {dimension_semantics = [#tpu.dimension_semantics<parallel>], iteration_bounds = array<i64: 1>, scalar_prefetch = 0 : i64, scratch_operands = 0 : i64, tpu.core_type = #tpu.core_type<tc>, window_params = [{transform_indices = @transform_0, window_bounds = array<i64: 128, 128>}, {pipeline_mode = #tpu.pipeline_mode<synchronous>, transform_indices = @transform_1, window_bounds = array<i64: 128, 128>}, {pipeline_mode = #tpu.pipeline_mode<synchronous>, transform_indices = @transform_2, window_bounds = array<i64: 1, 128>}, {transform_indices = @transform_3, window_bounds = array<i64: 128, 128>}]} {
    %c0 = arith.constant 0 : index
    %c0_0 = arith.constant 0 : index
    %0 = vector.load %arg1[%c0, %c0_0] : memref<128x128xf32, #tpu.memory_space<vmem>>, vector<128x128xf32>
    %c0_1 = arith.constant 0 : index
    %c0_2 = arith.constant 0 : index
    %1 = vector.load %arg2[%c0_1, %c0_2] : memref<128x128xbf16, #tpu.memory_space<vmem>>, vector<128x128xbf16>
    %2 = arith.truncf %0 : vector<128x128xf32> to vector<128x128xbf16>
    %cst = arith.constant dense<0.000000e+00> : vector<128x128xf32>
    %3 = tpu.matmul %2, %1, %cst {dimension_numbers = #tpu.dot_dimension_numbers<[1], [0], [0], [1], [0, 0, 1, 1], [], []>} : vector<128x128xbf16>, vector<128x128xbf16>, vector<128x128xf32> -> vector<128x128xf32>
    %c0_3 = arith.constant 0 : index
    %c0_4 = arith.constant 0 : index
    %4 = vector.load %arg3[%c0_3, %c0_4] : memref<1x128xf32, #tpu.memory_space<vmem>>, vector<1x128xf32>
    %5 = vector.broadcast %4 : vector<1x128xf32> to vector<128x128xf32>
    %6 = arith.addf %3, %5 : vector<128x128xf32>
    %c0_5 = arith.constant 0 : index
    %c0_6 = arith.constant 0 : index
    %7 = vector.load %arg4[%c0_5, %c0_6] : memref<128x128xf32, #tpu.memory_space<vmem>>, vector<128x128xf32>
    tpu.vector_store %arg4[%c0_5, %c0_6], %6 {strides = array<i32>} : memref<128x128xf32, #tpu.memory_space<vmem>>, vector<128x128xf32>,
    return
  }
  func.func @transform_0(%arg0: i32) -> (i32, i32) {
    %c0_i32 = arith.constant 0 : i32
    %c0_i32_0 = arith.constant 0 : i32
    return %arg0, %c0_i32 : i32, i32
  }
  func.func @transform_1(%arg0: i32) -> (i32, i32) {
    %c0_i32 = arith.constant 0 : i32
    %c0_i32_0 = arith.constant 0 : i32
    %c0_i32_1 = arith.constant 0 : i32
    return %c0_i32, %c0_i32_0 : i32, i32
  }
  func.func @transform_2(%arg0: i32) -> (i32, i32) {
    %c0_i32 = arith.constant 0 : i32
    %c0_i32_0 = arith.constant 0 : i32
    %c0_i32_1 = arith.constant 0 : i32
    return %c0_i32, %c0_i32_0 : i32, i32
  }
  func.func @transform_3(%arg0: i32) -> (i32, i32) {
    %c0_i32 = arith.constant 0 : i32
    %c0_i32_0 = arith.constant 0 : i32
    return %arg0, %c0_i32 : i32, i32
  }
}

</mosaic_0001>

<llo_original>
// kernel: tpu_custom_call.1
$region0: #{tpu_custom_call.1}
  #allocation0 [shape = 'u32[]', space=smem, size = 0x4, offset = 0x4, fixed_abs, tag = 'smem constant byte address 0x4 - core index']
  #allocation1 [shape = 'u32[144,128]{1,0:T(1,128)}', space=vmem, size = 0x12000, scoped, tag = 'internal scratch']
  %s0 = inlined_call_operand.hbm [shape: f32[128,128], index: 0, kind: input, shape index: {}]
  %s1 = inlined_call_operand.hbm [shape: bf16[128,128], index: 1, kind: input, shape index: {}]
  %s2 = inlined_call_operand.vmem [shape: f32[1,128], index: 2, kind: input, shape index: {}]
  %s3 = inlined_call_operand.hbm [shape: f32[128,128], index: 3, kind: output, shape index: {}]
  %s4 = sld [smem:[#allocation0]]
  $region30: #{tpu_custom_call.1} parent=0
    _
  %s6 = ssub.s32 1, %s4
  %s7 = scalar_select 0, %s6, %s4
  $region1: #{tpu_custom_call.1} parent=0
    #allocation2 [shape = 'u8[65536]{0}', space=vmem, size = 0x10000, scoped, tag = 'input window, operand 0, single buffered']
    #allocation3 [shape = 's32[1]{0}', space=sflag, size = 0x4, scoped, tag = 'scoped memory for tpu_custom_call.1']
    #allocation4 [shape = 's32[1]{0}', space=sflag, size = 0x4, scoped, tag = 'scoped memory for tpu_custom_call.1']
    #allocation5 [shape = 'u8[32768]{0}', space=vmem, size = 0x8000, scoped, tag = 'input window, operand 1, single buffered']
    #allocation6 [shape = 's32[1]{0}', space=sflag, size = 0x4, scoped, tag = 'scoped memory for tpu_custom_call.1']
    #allocation7 [shape = 'u8[65536]{0}', space=vmem, size = 0x10000, scoped, tag = 'output window, operand 0, single buffered']
    %8 = vsyncpa [#allocation3], 0
    %9 = vsyncpa [#allocation6], 0
    %10 = vsyncpa [#allocation4], 0
    // Predicated region
    $region2: #{tpu_custom_call.1} parent=1 // pred_check
      _
    $region3: #{tpu_custom_call.1} parent=1 // pred_check_branch
      %12 = sbr.rel (0) target = $region5
    $region4: #{tpu_custom_call.1} parent=1 // pred_region
      %s14 = ssub.s32 2048, 2048
      %15 = vsyncadd [#allocation3], %s14
      %s16 = sshll.u32 [#allocation2], 4
      %s17 = int_to_ptr.vmem [resolvable:$true] %s16
      %22 = dma.hbm_to_vmem [thread:$0]  %s0, 2048, %s17, [#allocation3], 128, 128, 8
    $region5: #{tpu_custom_call.1} parent=1 // pred_fallthru
      _
    // Predicated region
    $region6: #{tpu_custom_call.1} parent=1 // pred_check
      _
    $region7: #{tpu_custom_call.1} parent=1 // pred_check_branch
      %24 = sbr.rel (0) target = $region9
    $region8: #{tpu_custom_call.1} parent=1 // pred_region
      %s26 = ssub.s32 1024, 1024
      %27 = vsyncadd [#allocation6], %s26
      %s28 = sshll.u32 [#allocation5], 4
      %s29 = int_to_ptr.vmem [resolvable:$true] %s28
      %34 = dma.hbm_to_vmem [thread:$0]  %s1, 1024, %s29, [#allocation6], 64, 64, 4
    $region9: #{tpu_custom_call.1} parent=1 // pred_fallthru
      _
    // Predicated region
    $region10: #{tpu_custom_call.1} parent=1 // pred_check
      _
    $region11: #{tpu_custom_call.1} parent=1 // pred_check_branch
      %36 = sbr.rel (0) target = $region13
    $region12: #{tpu_custom_call.1} parent=1 // pred_region
      _
    $region13: #{tpu_custom_call.1} parent=1 // pred_fallthru
      _
    // Predicated region
    $region14: #{tpu_custom_call.1} parent=1 // pred_check
      _
    $region15: #{tpu_custom_call.1} parent=1 // pred_check_branch
      %38 = sbr.rel (0) target = $region17
    $region16: #{tpu_custom_call.1} parent=1 // pred_region
      %39 = dma.done [#allocation3], 2048
    $region17: #{tpu_custom_call.1} parent=1 // pred_fallthru
      _
    // Predicated region
    $region18: #{tpu_custom_call.1} parent=1 // pred_check
      _
    $region19: #{tpu_custom_call.1} parent=1 // pred_check_branch
      %41 = sbr.rel (0) target = $region21
    $region20: #{tpu_custom_call.1} parent=1 // pred_region
      %42 = dma.done [#allocation6], 1024
    $region21: #{tpu_custom_call.1} parent=1 // pred_fallthru
      _
    %v44 = vld [vmem:[#allocation2] sm:$0xff]
    %v45 = vld [vmem:[#allocation2 + $0x8] sm:$0xff]
    %v46 = vld [vmem:[#allocation2 + $0x10] sm:$0xff]
    %v47 = vld [vmem:[#allocation2 + $0x18] sm:$0xff]
    %v48 = vld [vmem:[#allocation2 + $0x20] sm:$0xff]
    %v49 = vld [vmem:[#allocation2 + $0x28] sm:$0xff]
    %v50 = vld [vmem:[#allocation2 + $0x30] sm:$0xff]
    %v51 = vld [vmem:[#allocation2 + $0x38] sm:$0xff]
    %v52 = vld [vmem:[#allocation2 + $0x40] sm:$0xff]
    %v53 = vld [vmem:[#allocation2 + $0x48] sm:$0xff]
    %v54 = vld [vmem:[#allocation2 + $0x50] sm:$0xff]
    %v55 = vld [vmem:[#allocation2 + $0x58] sm:$0xff]
    %v56 = vld [vmem:[#allocation2 + $0x60] sm:$0xff]
    %v57 = vld [vmem:[#allocation2 + $0x68] sm:$0xff]
    %v58 = vld [vmem:[#allocation2 + $0x70] sm:$0xff]
    %v59 = vld [vmem:[#allocation2 + $0x78] sm:$0xff]
    %v60 = vld [vmem:[#allocation5] sm:$0xf]
    %v61 = vld [vmem:[#allocation5 + $0x4] sm:$0xf]
    %v62 = vld [vmem:[#allocation5 + $0x8] sm:$0xf]
    %v63 = vld [vmem:[#allocation5 + $0xc] sm:$0xf]
    %v64 = vld [vmem:[#allocation5 + $0x10] sm:$0xf]
    %v65 = vld [vmem:[#allocation5 + $0x14] sm:$0xf]
    %v66 = vld [vmem:[#allocation5 + $0x18] sm:$0xf]
    %v67 = vld [vmem:[#allocation5 + $0x1c] sm:$0xf]
    %v68 = vld [vmem:[#allocation5 + $0x20] sm:$0xf]
    %v69 = vld [vmem:[#allocation5 + $0x24] sm:$0xf]
    %v70 = vld [vmem:[#allocation5 + $0x28] sm:$0xf]
    %v71 = vld [vmem:[#allocation5 + $0x2c] sm:$0xf]
    %v72 = vld [vmem:[#allocation5 + $0x30] sm:$0xf]
    %v73 = vld [vmem:[#allocation5 + $0x34] sm:$0xf]
    %v74 = vld [vmem:[#allocation5 + $0x38] sm:$0xf]
    %v75 = vld [vmem:[#allocation5 + $0x3c] sm:$0xf]
    %v76 = vpack.c.bf16 %v45, %v44
    %v77 = vpack.c.bf16 %v47, %v46
    %v78 = vpack.c.bf16 %v49, %v48
    %v79 = vpack.c.bf16 %v51, %v50
    %v80 = vpack.c.bf16 %v53, %v52
    %v81 = vpack.c.bf16 %v55, %v54
    %v82 = vpack.c.bf16 %v57, %v56
    %v83 = vpack.c.bf16 %v59, %v58
    %v84 = vld [vmem:[%s2] sm:$0x1]
    %v86 = vlaneseq
    %v87 = vshrl.u32 %v86, 7
    %v88 = vsub.s32 0, %v87
    %v89 = vrot.slane %v84, %v88
    %v107 = vunpack.c.l.b16 %v60
    %v108 = vunpack.c.l.b16 %v61
    %v109 = vunpack.c.l.b16 %v62
    %v110 = vunpack.c.l.b16 %v63
    %v111 = vunpack.c.l.b16 %v64
    %v112 = vunpack.c.l.b16 %v65
    %v113 = vunpack.c.l.b16 %v66
    %v114 = vunpack.c.l.b16 %v67
    %v115 = vunpack.c.l.b16 %v68
    %v116 = vunpack.c.l.b16 %v69
    %v117 = vunpack.c.l.b16 %v70
    %v118 = vunpack.c.l.b16 %v71
    %v119 = vunpack.c.l.b16 %v72
    %v120 = vunpack.c.l.b16 %v73
    %v121 = vunpack.c.l.b16 %v74
    %v122 = vunpack.c.l.b16 %v75
    %v123 = vpack.c.b16 %v108, %v107
    %v124 = vpack.c.b16 %v110, %v109
    %v125 = vpack.c.b16 %v112, %v111
    %v126 = vpack.c.b16 %v114, %v113
    %v127 = vpack.c.b16 %v116, %v115
    %v128 = vpack.c.b16 %v118, %v117
    %v129 = vpack.c.b16 %v120, %v119
    %v130 = vpack.c.b16 %v122, %v121
    %139 = vmatprep.subr.bf16.mxu0 0
    %140 = vmatpush1.bf16.msra.mxu0 %v130
    %141 = vmatprep.subr.bf16.mxu0 0
    %142 = vmatpush1.bf16.msra.mxu0 %v129
    %143 = vmatprep.subr.bf16.mxu0 0
    %144 = vmatpush1.bf16.msra.mxu0 %v128
    %145 = vmatprep.subr.bf16.mxu0 0
    %146 = vmatpush1.bf16.msra.mxu0 %v127
    %147 = vmatprep.subr.bf16.mxu0 0
    %148 = vmatpush1.bf16.msra.mxu0 %v126
    %149 = vmatprep.subr.bf16.mxu0 0
    %150 = vmatpush1.bf16.msra.mxu0 %v125
    %151 = vmatprep.subr.bf16.mxu0 0
    %152 = vmatpush1.bf16.msra.mxu0 %v124
    %153 = vmatprep.subr.bf16.mxu0 0
    %154 = vmatpush1.bf16.msra.mxu0 %v123
    %155 = vmatprep.subr.bf16.mxu0 0
    %156 = vmatpush2.bf16.msra.mxu0 0
    %157 = vmatprep.subr.bf16.mxu0 0
    %158 = vmatpush2.bf16.msra.mxu0 0
    %159 = vmatprep.subr.bf16.mxu0 0
    %160 = vmatpush2.bf16.msra.mxu0 0
    %161 = vmatprep.subr.bf16.mxu0 0
    %162 = vmatpush2.bf16.msra.mxu0 0
    %163 = vmatprep.subr.bf16.mxu0 0
    %164 = vmatpush2.bf16.msra.mxu0 0
    %165 = vmatprep.subr.bf16.mxu0 0
    %166 = vmatpush2.bf16.msra.mxu0 0
    %167 = vmatprep.subr.bf16.mxu0 0
    %168 = vmatpush2.bf16.msra.mxu0 0
    %169 = vmatprep.subr.bf16.mxu0 0
    %170 = vmatpush2.bf16.msra.mxu0 0
    %171 = vmatprep.mubr.bf16.mxu0 0
    %172 = vmatmul.mubr.bf16.gmra.mxu0 %v76
    %v173 = vpop.f32.mrf.mxu0
    %v174 = vadd.f32 %v89, %v173
    %v175 = vpop.f32.mrf.mxu0
    %v176 = vpop.f32.mrf.mxu0
    %v177 = vadd.f32 %v89, %v176
    %v178 = vpop.f32.mrf.mxu0
    %179 = vmatprep.mubr.bf16.mxu0 0
    %180 = vmatmul.mubr.bf16.gmra.mxu0 %v77
    %v181 = vpop.f32.mrf.mxu0
    %v182 = vadd.f32 %v89, %v181
    %v183 = vpop.f32.mrf.mxu0
    %v184 = vpop.f32.mrf.mxu0
    %v185 = vadd.f32 %v89, %v184
    %v186 = vpop.f32.mrf.mxu0
    %187 = vmatprep.mubr.bf16.mxu0 0
    %188 = vmatmul.mubr.bf16.gmra.mxu0 %v78
    %v189 = vpop.f32.mrf.mxu0
    %v190 = vadd.f32 %v89, %v189
    %v191 = vpop.f32.mrf.mxu0
    %v192 = vpop.f32.mrf.mxu0
    %v193 = vadd.f32 %v89, %v192
    %v194 = vpop.f32.mrf.mxu0
    %195 = vmatprep.mubr.bf16.mxu0 0
    %196 = vmatmul.mubr.bf16.gmra.mxu0 %v79
    %v197 = vpop.f32.mrf.mxu0
    %v198 = vadd.f32 %v89, %v197
    %v199 = vpop.f32.mrf.mxu0
    %v200 = vpop.f32.mrf.mxu0
    %v201 = vadd.f32 %v89, %v200
    %v202 = vpop.f32.mrf.mxu0
    %203 = vmatprep.mubr.bf16.mxu0 0
    %204 = vmatmul.mubr.bf16.gmra.mxu0 %v80
    %v205 = vpop.f32.mrf.mxu0
    %v206 = vadd.f32 %v89, %v205
    %v207 = vpop.f32.mrf.mxu0
    %v208 = vpop.f32.mrf.mxu0
    %v209 = vadd.f32 %v89, %v208
    %v210 = vpop.f32.mrf.mxu0
    %211 = vmatprep.mubr.bf16.mxu0 0
    %212 = vmatmul.mubr.bf16.gmra.mxu0 %v81
    %v213 = vpop.f32.mrf.mxu0
    %v214 = vadd.f32 %v89, %v213
    %v215 = vpop.f32.mrf.mxu0
    %v216 = vpop.f32.mrf.mxu0
    %v217 = vadd.f32 %v89, %v216
    %v218 = vpop.f32.mrf.mxu0
    %219 = vmatprep.mubr.bf16.mxu0 0
    %220 = vmatmul.mubr.bf16.gmra.mxu0 %v82
    %v221 = vpop.f32.mrf.mxu0
    %v222 = vadd.f32 %v89, %v221
    %v223 = vpop.f32.mrf.mxu0
    %v224 = vpop.f32.mrf.mxu0
    %v225 = vadd.f32 %v89, %v224
    %v226 = vpop.f32.mrf.mxu0
    %227 = vmatprep.mubr.bf16.mxu0 0
    %228 = vmatmul.mubr.bf16.gmra.mxu0 %v83
    %v229 = vpop.f32.mrf.mxu0
    %v230 = vadd.f32 %v89, %v229
    %v231 = vpop.f32.mrf.mxu0
    %v232 = vpop.f32.mrf.mxu0
    %v233 = vadd.f32 %v89, %v232
    %v234 = vpop.f32.mrf.mxu0
    %235 = vdwg.mxu0
    %236 = vst [vmem:[#allocation7] sm:$0xff] %v174
    %237 = vst [vmem:[#allocation7 + $0x8] sm:$0xff] %v177
    %238 = vst [vmem:[#allocation7 + $0x10] sm:$0xff] %v182
    %239 = vst [vmem:[#allocation7 + $0x18] sm:$0xff] %v185
    %240 = vst [vmem:[#allocation7 + $0x20] sm:$0xff] %v190
    %241 = vst [vmem:[#allocation7 + $0x28] sm:$0xff] %v193
    %242 = vst [vmem:[#allocation7 + $0x30] sm:$0xff] %v198
    %243 = vst [vmem:[#allocation7 + $0x38] sm:$0xff] %v201
    %244 = vst [vmem:[#allocation7 + $0x40] sm:$0xff] %v206
    %245 = vst [vmem:[#allocation7 + $0x48] sm:$0xff] %v209
    %246 = vst [vmem:[#allocation7 + $0x50] sm:$0xff] %v214
    %247 = vst [vmem:[#allocation7 + $0x58] sm:$0xff] %v217
    %248 = vst [vmem:[#allocation7 + $0x60] sm:$0xff] %v222
    %249 = vst [vmem:[#allocation7 + $0x68] sm:$0xff] %v225
    %250 = vst [vmem:[#allocation7 + $0x70] sm:$0xff] %v230
    %251 = vst [vmem:[#allocation7 + $0x78] sm:$0xff] %v233
    // Predicated region
    $region22: #{tpu_custom_call.1} parent=1 // pred_check
      _
    $region23: #{tpu_custom_call.1} parent=1 // pred_check_branch
      %253 = sbr.rel (0) target = $region25
    $region24: #{tpu_custom_call.1} parent=1 // pred_region
      %s255 = ssub.s32 2048, 2048
      %256 = vsyncadd [#allocation4], %s255
      %s257 = sshll.u32 [#allocation7], 4
      %s258 = int_to_ptr.vmem [resolvable:$true] %s257
      %263 = dma.vmem_to_hbm [thread:$0]  %s258, 2048, %s3, [#allocation4], 128, 128, 8
    $region25: #{tpu_custom_call.1} parent=1 // pred_fallthru
      _
    // Predicated region
    $region26: #{tpu_custom_call.1} parent=1 // pred_check
      _
    $region27: #{tpu_custom_call.1} parent=1 // pred_check_branch
      %265 = sbr.rel (0) target = $region29
    $region28: #{tpu_custom_call.1} parent=1 // pred_region
      %266 = dma.done [#allocation4], 2048
    $region29: #{tpu_custom_call.1} parent=1 // pred_fallthru
      _
    %267 = vsyncpa [#allocation3], 1
    %268 = vsyncpa [#allocation6], 1
    %269 = vsyncpa [#allocation4], 1

</llo_original>
